<compile_context>
chip_gen: v7x
topology: tpu7x:2x2x1
jax: 0.10.0
libtpu: 0.0.40
codegen_flags: <defaults>
</compile_context>

<pallas_src>
import jax
import jax.numpy as jnp
from jax.experimental import pallas as pl
from jax.experimental.pallas import tpu as pltpu


# --------------------------------------------------------------------------- #
# helpers
# --------------------------------------------------------------------------- #
def _round_up(x, m):
    return (x + m - 1) // m * m


def _cdiv(a, b):
    return -(-a // b)


def _sublane(dtype):
    # 8 sublanes of 32-bit; packed dtypes need 32 // itemsize rows per sublane tile.
    return max(8, 32 // jnp.dtype(dtype).itemsize)


def _vmem_capacity():
    try:
        return int(pltpu.get_tpu_info().vmem_capacity_bytes)
    except Exception:
        return 64 << 20  # conservative fallback (v7x per-TensorCore)


def _fp_simple(tm, hp, in_item, out_item):
    """Double-buffered x/out tiles + (conservatively double-buffered) resident W_eff."""
    return 2 * (tm * hp * in_item + tm * hp * out_item + hp * hp * in_item)


def _fp_general(tm, tn, tk, in_item, out_item):
    """Double-buffered x/w/out tiles + f32 accumulator scratch."""
    return 2 * (tm * tk * in_item + tk * tn * in_item + tm * tn * out_item) + tm * tn * 4


def _choose_tm_simple(m, hp, in_item, out_item, sub, budget, two_tc):
    w_bytes = 2 * hp * hp * in_item
    avail = budget - w_bytes
    if avail <= 0:
        return None
    per_row = 2 * hp * (in_item + out_item)
    tm_max = (avail // per_row // sub) * sub
    if tm_max < sub:
        return None
    tm = min(512, _round_up(m, sub), tm_max)
    # On 2-TensorCore chips (64 MiB VMEM/TC), keep >= 2 M tiles when M allows
    # so both cores get work via the "parallel" M axis.
    if two_tc and m > sub:
        tm = min(tm, _round_up(_cdiv(m, 2), sub))
    return max(sub, tm)


def _choose_tiles_general(m, hp, in_item, out_item, sub, budget, two_tc):
    tm = min(512, _round_up(m, sub))
    if two_tc and m > sub:
        tm = min(tm, _round_up(_cdiv(m, 2), sub))
    while True:
        for t in (512, 256, 128):
            if hp % t == 0 and _fp_general(tm, t, t, in_item, out_item) <= budget:
                return tm, t, t
        if tm <= sub:
            return sub, 128, 128
        tm = max(sub, (tm // 2 // sub) * sub)


# --------------------------------------------------------------------------- #
# kernels
# --------------------------------------------------------------------------- #
def _ptbmlp_kernel_simple(x_ref, w_ref, o_ref):
    # Residual already folded into w (W_eff = I + ...): one dot, direct store.
    o_ref[...] = jnp.dot(
        x_ref[...], w_ref[...], preferred_element_type=jnp.float32
    ).astype(o_ref.dtype)


def _ptbmlp_kernel_tiled(x_ref, w_ref, o_ref, acc_ref):
    k = pl.program_id(2)

    @pl.when(k == 0)
    def _init():
        acc_ref[...] = jnp.zeros_like(acc_ref)

    acc_ref[...] += jnp.dot(x_ref[...], w_ref[...], preferred_element_type=jnp.float32)

    @pl.when(k == pl.num_programs(2) - 1)
    def _finalize():
        o_ref[...] = acc_ref[...].astype(o_ref.dtype)


# --------------------------------------------------------------------------- #
# packing (ONCE, at weight-load time) + forward wrapper
# --------------------------------------------------------------------------- #
def pack_ptbmlp_weights(w1_m1, w2_m1, w1_m2, w2_m2, compute_dtype=None):
    """W_eff = I + W1a^T @ W2a^T + W1b^T @ W2b^T, zero-padded to (Hp, Hp).

    Exact because PTBMLP has no activation between fc1 and fc2 and the
    residual is linear.  Pack-time matmuls run in f32; `compute_dtype`
    (default: the weights' dtype) selects the kernel compute precision
    (use jnp.bfloat16 for native MXU rate on v5e/v6e/v7x).
    """
    h = w1_m1.shape[1]
    hp = _round_up(h, 128)
    f32 = jnp.float32
    w_eff = (
        jnp.eye(h, dtype=f32)
        + jnp.dot(w1_m1.T.astype(f32), w2_m1.T.astype(f32))
        + jnp.dot(w1_m2.T.astype(f32), w2_m2.T.astype(f32))
    )
    if compute_dtype is None:
        compute_dtype = w1_m1.dtype
    w_eff = w_eff.astype(compute_dtype)
    if hp != h:
        w_eff = jnp.pad(w_eff, ((0, hp - h), (0, hp - h)))
    return w_eff


def ptbmlp_forward_packed(x, w_eff):
    """x: (..., H); w_eff: (Hp, Hp) from pack_ptbmlp_weights.  Returns x.dtype."""
    orig_shape = x.shape
    h = orig_shape[-1]
    hp = w_eff.shape[0]
    assert w_eff.shape == (hp, hp) and hp == _round_up(h, 128)

    compute_dtype = w_eff.dtype
    out_dtype = x.dtype
    in_item = jnp.dtype(compute_dtype).itemsize
    out_item = jnp.dtype(out_dtype).itemsize
    sub = _sublane(compute_dtype)

    x2d = x.reshape(-1, h)
    if x2d.dtype != compute_dtype:
        x2d = x2d.astype(compute_dtype)
    m = x2d.shape[0]

    vmem_cap = _vmem_capacity()
    budget = int(vmem_cap * 0.6)
    two_tc = vmem_cap <= (64 << 20)  # v7x: 64 MiB VMEM per TC, 2 TCs/chip

    tm_simple = _choose_tm_simple(m, hp, in_item, out_item, sub, budget, two_tc)

    if tm_simple is not None:
        # ----- fast path: whole W_eff resident, single-dot kernel ----------
        tm = tm_simple
        mp = _round_up(m, tm)
        x_p = jnp.pad(x2d, ((0, mp - m), (0, hp - h))) if (mp != m or hp != h) else x2d

        grid = (mp // tm,)
        fp_bytes = _fp_simple(tm, hp, in_item, out_item)
        vmem_limit = int(min(max(fp_bytes + (8 << 20), 16 << 20), int(vmem_cap * 0.9)))
        cost = pl.CostEstimate(
            flops=2 * mp * hp * hp,
            transcendentals=0,
            bytes_accessed=mp * hp * (in_item + out_item) + hp * hp * in_item,
        )

        out_p = pl.pallas_call(
            _ptbmlp_kernel_simple,
            out_shape=jax.ShapeDtypeStruct((mp, hp), out_dtype),
            grid_spec=pltpu.PrefetchScalarGridSpec(
                num_scalar_prefetch=0,
                grid=grid,
                in_specs=[
                    pl.BlockSpec((tm, hp), lambda i: (i, 0)),   # x row tile
                    pl.BlockSpec((hp, hp), lambda i: (0, 0)),   # W_eff (held resident)
                ],
                out_specs=pl.BlockSpec((tm, hp), lambda i: (i, 0)),
            ),
            compiler_params=pltpu.CompilerParams(
                dimension_semantics=("parallel",),
                vmem_limit_bytes=vmem_limit,
            ),
            cost_estimate=cost,
        )(x_p, w_eff)
    else:
        # ----- general path: (M, N, K) tiled matmul with f32 accumulator ---
        tm, tn, tk = _choose_tiles_general(m, hp, in_item, out_item, sub, budget, two_tc)
        mp = _round_up(m, tm)
        x_p = jnp.pad(x2d, ((0, mp - m), (0, hp - h))) if (mp != m or hp != h) else x2d

        grid = (mp // tm, hp // tn, hp // tk)
        fp_bytes = _fp_general(tm, tn, tk, in_item, out_item)
        vmem_limit = int(min(max(fp_bytes + (8 << 20), 16 << 20), int(vmem_cap * 0.9)))
        cost = pl.CostEstimate(
            flops=2 * mp * hp * hp,
            transcendentals=0,
            bytes_accessed=grid[1] * mp * hp * in_item
            + grid[0] * hp * hp * in_item
            + mp * hp * out_item,
        )

        out_p = pl.pallas_call(
            _ptbmlp_kernel_tiled,
            out_shape=jax.ShapeDtypeStruct((mp, hp), out_dtype),
            grid_spec=pltpu.PrefetchScalarGridSpec(
                num_scalar_prefetch=0,
                grid=grid,
                in_specs=[
                    pl.BlockSpec((tm, tk), lambda i, j, k: (i, k)),
                    pl.BlockSpec((tk, tn), lambda i, j, k: (k, j)),
                ],
                out_specs=pl.BlockSpec((tm, tn), lambda i, j, k: (i, j)),
                scratch_shapes=[pltpu.VMEM((tm, tn), jnp.float32)],
            ),
            compiler_params=pltpu.CompilerParams(
                dimension_semantics=("parallel", "parallel", "arbitrary"),
                vmem_limit_bytes=vmem_limit,
            ),
            cost_estimate=cost,
        )(x_p, w_eff)

    out2d = out_p if (mp == m and hp == h) else out_p[:m, :h]
    return out2d.reshape(orig_shape)


def ptbmlp_forward(x, w1_m1, w2_m1, w1_m2, w2_m2, compute_dtype=None):
    """Convenience wrapper: in a real model call pack_ptbmlp_weights ONCE."""
    w_eff = pack_ptbmlp_weights(w1_m1, w2_m1, w1_m2, w2_m2, compute_dtype)
    return ptbmlp_forward_packed(x, w_eff)


def _reference(x, w1_m1, w2_m1, w1_m2, w2_m2):
    y1 = (x @ w1_m1.T) @ w2_m1.T
    y2 = (x @ w1_m2.T) @ w2_m2.T
    return x + y1 + y2


# --------------------------------------------------------------------------- #
# tests
# --------------------------------------------------------------------------- #
if __name__ == "__main__":
    def init_w(k, out_f, in_f):
        bound = 1.0 / jnp.sqrt(float(in_f))
        return jax.random.uniform(k, (out_f, in_f), jnp.float32, -bound, bound)

    # --- primary test: shapes implied by the module (hidden=32) -------------
    hidden = 32
    batch, seq = 2, 8

    key = jax.random.PRNGKey(0)
    kx, k1, k2, k3, k4 = jax.random.split(key, 5)
    x = jax.random.normal(kx, (batch, seq, hidden), dtype=jnp.float32)

    w1_m1 = init_w(k1, hidden * 4, hidden)   # m1.fc1.weight
    w2_m1 = init_w(k2, hidden, hidden * 4)   # m1.fc2.weight
    w1_m2 = init_w(k3, hidden * 4, hidden)   # m2.fc1.weight
    w2_m2 = init_w(k4, hidden, hidden * 4)   # m2.fc2.weight

    w_eff = pack_ptbmlp_weights(w1_m1, w2_m1, w1_m2, w2_m2)      # once, "at load"
    out = jax.block_until_ready(ptbmlp_forward_packed(x, w_eff))

    ref = _reference(x, w1_m1, w2_m1, w1_m2, w2_m2)
    assert out.shape == x.shape
    assert jnp.allclose(out, ref, atol=1e-4, rtol=1e-4), "mismatch vs reference (H=32, f32)"

    # --- secondary test: exercises M/H zero-padding --------------------------
    hidden2 = 96
    kx2, k5, k6, k7, k8 = jax.random.split(jax.random.PRNGKey(1), 5)
    x2 = jax.random.normal(kx2, (2, 40, hidden2), dtype=jnp.float32)
    w1a = init_w(k5, hidden2 * 4, hidden2)
    w2a = init_w(k6, hidden2, hidden2 * 4)
    w1b = init_w(k7, hidden2 * 4, hidden2)
    w2b = init_w(k8, hidden2, hidden2 * 4)

    out2 = jax.block_until_ready(ptbmlp_forward(x2, w1a, w2a, w1b, w2b))
    ref2 = _reference(x2, w1a, w2a, w1b, w2b)
    assert out2.shape == x2.shape
    assert jnp.allclose(out2, ref2, atol=1e-3, rtol=1e-3), "mismatch vs reference (H=96, f32)"

    # --- bf16 compute path (native MXU rate); looser tolerance vs f32 ref ----
    w_eff_bf16 = pack_ptbmlp_weights(w1_m1, w2_m1, w1_m2, w2_m2,
                                     compute_dtype=jnp.bfloat16)
    out3 = jax.block_until_ready(ptbmlp_forward_packed(x, w_eff_bf16))
    assert out3.shape == x.shape and out3.dtype == x.dtype
    assert jnp.allclose(out3, ref, atol=1e-1, rtol=5e-2), "mismatch vs reference (bf16)"

    print("KERNEL_OK")
</pallas_src>

<mosaic_0001>
module attributes {stable_mosaic.version = 11 : i64} {
  func.func @_ptbmlp_kernel_simple(%arg0: i32, %arg1: memref<8x128xf32, #tpu.memory_space<vmem>>, %arg2: memref<128x128xf32, #tpu.memory_space<vmem>>, %arg3: memref<8x128xf32, #tpu.memory_space<vmem>>) attributes {dimension_semantics = [#tpu.dimension_semantics<parallel>], iteration_bounds = array<i64: 2>, scalar_prefetch = 0 : i64, scratch_operands = 0 : i64, tpu.core_type = #tpu.core_type<tc>, window_params = [{transform_indices = @transform_0, window_bounds = array<i64: 8, 128>}, {pipeline_mode = #tpu.pipeline_mode<synchronous>, transform_indices = @transform_1, window_bounds = array<i64: 128, 128>}, {transform_indices = @transform_2, window_bounds = array<i64: 8, 128>}]} {
    %c0 = arith.constant 0 : index
    %c0_0 = arith.constant 0 : index
    %0 = vector.load %arg1[%c0, %c0_0] : memref<8x128xf32, #tpu.memory_space<vmem>>, vector<8x128xf32>
    %c0_1 = arith.constant 0 : index
    %c0_2 = arith.constant 0 : index
    %1 = vector.load %arg2[%c0_1, %c0_2] : memref<128x128xf32, #tpu.memory_space<vmem>>, vector<128x128xf32>
    %cst = arith.constant dense<0.000000e+00> : vector<8x128xf32>
    %2 = tpu.matmul %0, %1, %cst {dimension_numbers = #tpu.dot_dimension_numbers<[1], [0], [0], [1], [0, 0, 1, 1], [], []>} : vector<8x128xf32>, vector<128x128xf32>, vector<8x128xf32> -> vector<8x128xf32>
    %c0_3 = arith.constant 0 : index
    %c0_4 = arith.constant 0 : index
    %3 = vector.load %arg3[%c0_3, %c0_4] : memref<8x128xf32, #tpu.memory_space<vmem>>, vector<8x128xf32>
    tpu.vector_store %arg3[%c0_3, %c0_4], %2 {strides = array<i32>} : memref<8x128xf32, #tpu.memory_space<vmem>>, vector<8x128xf32>,
    return
  }
  func.func @transform_0(%arg0: i32) -> (i32, i32) {
    %c0_i32 = arith.constant 0 : i32
    %c0_i32_0 = arith.constant 0 : i32
    return %arg0, %c0_i32 : i32, i32
  }
  func.func @transform_1(%arg0: i32) -> (i32, i32) {
    %c0_i32 = arith.constant 0 : i32
    %c0_i32_0 = arith.constant 0 : i32
    %c0_i32_1 = arith.constant 0 : i32
    return %c0_i32, %c0_i32_0 : i32, i32
  }
  func.func @transform_2(%arg0: i32) -> (i32, i32) {
    %c0_i32 = arith.constant 0 : i32
    %c0_i32_0 = arith.constant 0 : i32
    return %arg0, %c0_i32 : i32, i32
  }
}

</mosaic_0001>

<llo_original>
// kernel: tpu_custom_call.1
$region0: #{tpu_custom_call.1}
  #allocation0 [shape = 'u32[]', space=smem, size = 0x4, offset = 0x4, fixed_abs, tag = 'smem constant byte address 0x4 - core index']
  #allocation1 [shape = 'u32[144,128]{1,0:T(1,128)}', space=vmem, size = 0x12000, scoped, tag = 'internal scratch']
  %s0 = inlined_call_operand.hbm [shape: f32[16,128], index: 0, kind: input, shape index: {}]
  %s1 = inlined_call_operand.hbm [shape: f32[128,128], index: 1, kind: input, shape index: {}]
  %s2 = inlined_call_operand.hbm [shape: f32[16,128], index: 2, kind: output, shape index: {}]
  %s3 = sld [smem:[#allocation0]]
  $region49: #{tpu_custom_call.1} parent=0
    _
  %s5 = ssub.s32 1, %s3
  %s6 = scalar_select 0, %s5, %s3
  $region1: #{tpu_custom_call.1} parent=0
    #allocation2 [shape = 'u8[8192]{0}', space=vmem, size = 0x2000, scoped, tag = 'input window, operand 0']
    #allocation3 [shape = 's32[2]{0}', space=sflag, size = 0x8, scoped, tag = 'scoped memory for tpu_custom_call.1']
    #allocation4 [shape = 's32[2]{0}', space=sflag, size = 0x8, scoped, tag = 'scoped memory for tpu_custom_call.1']
    #allocation5 [shape = 'u8[65536]{0}', space=vmem, size = 0x10000, scoped, tag = 'input window, operand 1, single buffered']
    #allocation6 [shape = 's32[1]{0}', space=sflag, size = 0x4, scoped, tag = 'scoped memory for tpu_custom_call.1']
    #allocation7 [shape = 'u8[8192]{0}', space=vmem, size = 0x2000, scoped, tag = 'output window, operand 0']
    %7 = vsyncpa [#allocation3], 0
    %s8 = scalar_lea.sflag [#allocation3], 1
    %9 = vsyncpa %s8, 0
    %10 = vsyncpa [#allocation6], 0
    %11 = vsyncpa [#allocation4], 0
    %s12 = scalar_lea.sflag [#allocation4], 1
    %13 = vsyncpa %s12, 0
    loop: start=0, step=1, limit=4
    $region2: #{tpu_custom_call.1} parent=1 // loop_pre_header
      _
    $region3: #{tpu_custom_call.1} parent=1 // loop_header
      %s15 = sphi 0, %s19
      %p16 = scmp.ge.s32.totalorder %s15, 4
      %s25 = sphi 0, %s27
      %s28 = sphi 0, %s25
      %s29 = sphi 0, %s28
      %s45 = sphi 0, %s29
      %s49 = sphi 0, %s49
      %s51 = sphi 0, %s49
      %s52 = sphi 0, %s51
      %s66 = sphi 0, %s52
      %s72 = sphi 0, %s74
      %s75 = sphi 0, %s72
      %s76 = sphi 0, %s75
      %s92 = sphi 0, %s76
    $region4: #{tpu_custom_call.1} parent=1 // loop_header_branch
      %18 = sbr.rel (%p16) target = $region8
    $region5: #{tpu_custom_call.1} parent=1 // loop_body
      %s20 = ssub.s32 %s15, 1
      %s21 = ssub.s32 %s15, 2
      %s22 = sadd.s32 %s15, 1
      %s23 = ssub.s32 %s15, %s22
      %p24 = scmp.eq.s32.totalorder %s23, 0
      %s26 = sadd.s32 %s25, 1
      %s27 = scalar_select %p24, %s25, %s26
      %p30 = pneg %p24
      %p31 = scmp.eq.s32.totalorder %s15, 1
      %p32 = por %p30, %p31
      %p33 = scmp.ne.s32.totalorder %s25, %s28
      %p34 = scmp.eq.s32.totalorder %s15, 0
      %p35 = por %p33, %p34
      %p36 = scmp.ne.s32.totalorder %s25, %s28
      %p37 = scmp.eq.s32.totalorder %s20, 1
      %p38 = por %p36, %p37
      %p39 = scmp.ne.s32.totalorder %s28, %s29
      %p40 = scmp.eq.s32.totalorder %s20, 0
      %p41 = por %p39, %p40
      %p42 = scmp.ne.s32.totalorder %s28, %s29
      %p43 = scmp.eq.s32.totalorder %s21, 1
      %p44 = por %p42, %p43
      %p46 = scmp.ne.s32.totalorder %s29, %s45
      %p47 = scmp.eq.s32.totalorder %s21, 0
      %p48 = por %p46, %p47
      %s50 = sadd.s32 %s49, 1
      %p53 = scmp.eq.s32.totalorder %s15, 1
      %p54 = scmp.ne.s32.totalorder %s49, %s51
      %p55 = scmp.eq.s32.totalorder %s15, 0
      %p56 = por %p54, %p55
      %p57 = scmp.ne.s32.totalorder %s49, %s51
      %p58 = scmp.eq.s32.totalorder %s20, 1
      %p59 = por %p57, %p58
      %p60 = scmp.ne.s32.totalorder %s51, %s52
      %p61 = scmp.eq.s32.totalorder %s20, 0
      %p62 = por %p60, %p61
      %p63 = scmp.ne.s32.totalorder %s51, %s52
      %p64 = scmp.eq.s32.totalorder %s21, 1
      %p65 = por %p63, %p64
      %p67 = scmp.ne.s32.totalorder %s52, %s66
      %p68 = scmp.eq.s32.totalorder %s21, 0
      %p69 = por %p67, %p68
      %s70 = ssub.s32 %s15, %s22
      %p71 = scmp.eq.s32.totalorder %s70, 0
      %s73 = sadd.s32 %s72, 1
      %s74 = scalar_select %p71, %s72, %s73
      %p77 = pneg %p71
      %p78 = scmp.eq.s32.totalorder %s15, 1
      %p79 = por %p77, %p78
      %p80 = scmp.ne.s32.totalorder %s72, %s75
      %p81 = scmp.eq.s32.totalorder %s15, 0
      %p82 = por %p80, %p81
      %p83 = scmp.ne.s32.totalorder %s72, %s75
      %p84 = scmp.eq.s32.totalorder %s20, 1
      %p85 = por %p83, %p84
      %p86 = scmp.ne.s32.totalorder %s75, %s76
      %p87 = scmp.eq.s32.totalorder %s20, 0
      %p88 = por %p86, %p87
      %p89 = scmp.ne.s32.totalorder %s75, %s76
      %p90 = scmp.eq.s32.totalorder %s21, 1
      %p91 = por %p89, %p90
      %p93 = scmp.ne.s32.totalorder %s76, %s92
      %p94 = scmp.eq.s32.totalorder %s21, 0
      %p95 = por %p93, %p94
      %p96 = scmp.le.s32.totalorder 1, %s15
      %p97 = scmp.lt.s32.totalorder %s15, 3
      %p98 = pnand %p96, %p97
      %p99 = pneg %p98
      // Predicated region
      $region9: #{tpu_custom_call.1} parent=5 // pred_check
        _
      $region10: #{tpu_custom_call.1} parent=5 // pred_check_branch
        %101 = sbr.rel (%p98) target = $region12
      $region11: #{tpu_custom_call.1} parent=5 // pred_region
        %s102 = ssub.s32 %s15, 1
        // Predicated region
        $region13: #{tpu_custom_call.1} parent=11 // pred_check
          %p103 = pneg %p62
        $region14: #{tpu_custom_call.1} parent=11 // pred_check_branch
          %105 = sbr.rel (%p103) target = $region16
        $region15: #{tpu_custom_call.1} parent=11 // pred_region
          %s107 = ssub.s32 2048, 2048
          %108 = vsyncadd [#allocation6], %s107
          %s109 = sshll.u32 [#allocation5], 4
          %s110 = int_to_ptr.vmem [resolvable:$true] %s109
          %115 = dma.hbm_to_vmem [thread:$0]  %s1, 2048, %s110, [#allocation6], 128, 128, 8
        $region16: #{tpu_custom_call.1} parent=11 // pred_fallthru
          _
      $region12: #{tpu_custom_call.1} parent=5 // pred_fallthru
        _
      %p116 = scmp.lt.s32.totalorder %s15, 2
      // Predicated region
      $region17: #{tpu_custom_call.1} parent=5 // pred_check
        %p117 = pneg %p116
      $region18: #{tpu_custom_call.1} parent=5 // pred_check_branch
        %119 = sbr.rel (%p117) target = $region20
      $region19: #{tpu_custom_call.1} parent=5 // pred_region
        // Predicated region
        $region21: #{tpu_custom_call.1} parent=19 // pred_check
          %p120 = pneg %p35
        $region22: #{tpu_custom_call.1} parent=19 // pred_check_branch
          %122 = sbr.rel (%p120) target = $region24
        $region23: #{tpu_custom_call.1} parent=19 // pred_region
          %s123 = sand.u32 %s25, 1
          %s124 = scalar_lea.sflag [#allocation3], %s123
          %s125 = sand.u32 %s25, 1
          %s126 = smul.addr %s125, 8
          %s127 = scalar_lea.vmem [#allocation2], %s126
          %s129 = ssub.s32 128, 128
          %130 = vsyncadd %s124, %s129
          %s131 = smul.addr %s15, 128
          %s132 = scalar_lea.hbm %s0, %s131
          %s134 = sshll.u32 %s127, 4
          %s135 = int_to_ptr.vmem [resolvable:$true] %s134
          %137 = dma.hbm_to_vmem [thread:$0]  %s132, 128, %s135, %s124
        $region24: #{tpu_custom_call.1} parent=19 // pred_fallthru
          _
      $region20: #{tpu_custom_call.1} parent=5 // pred_fallthru
        _
      %p138 = scmp.le.s32.totalorder 1, %s15
      %p139 = scmp.lt.s32.totalorder %s15, 3
      %p140 = pnand %p138, %p139
      %p141 = pneg %p140
      // Predicated region
      $region25: #{tpu_custom_call.1} parent=5 // pred_check
        _
      $region26: #{tpu_custom_call.1} parent=5 // pred_check_branch
        %143 = sbr.rel (%p140) target = $region28
      $region27: #{tpu_custom_call.1} parent=5 // pred_region
        %s144 = ssub.s32 %s15, 1
        %s145 = sand.u32 %s28, 1
        %s146 = scalar_lea.sflag [#allocation3], %s145
        %s147 = sand.u32 %s28, 1
        %s148 = smul.addr %s147, 8
        %s149 = scalar_lea.vmem [#allocation2], %s148
        // Predicated region
        $region29: #{tpu_custom_call.1} parent=27 // pred_check
          %p150 = pneg %p41
        $region30: #{tpu_custom_call.1} parent=27 // pred_check_branch
          %152 = sbr.rel (%p150) target = $region32
        $region31: #{tpu_custom_call.1} parent=27 // pred_region
          %153 = dma.done %s146, 128
        $region32: #{tpu_custom_call.1} parent=27 // pred_fallthru
          _
        // Predicated region
        $region33: #{tpu_custom_call.1} parent=27 // pred_check
          %p154 = pneg %p62
        $region34: #{tpu_custom_call.1} parent=27 // pred_check_branch
          %156 = sbr.rel (%p154) target = $region36
        $region35: #{tpu_custom_call.1} parent=27 // pred_region
          %157 = dma.done [#allocation6], 2048
        $region36: #{tpu_custom_call.1} parent=27 // pred_fallthru
          _
        %s158 = sand.u32 %s28, 1
        %s159 = scalar_lea.sflag [#allocation3], %s158
        %s160 = sand.u32 %s28, 1
        %s161 = smul.addr %s160, 8
        %s162 = scalar_lea.vmem [#allocation2], %s161
        %p163 = pneg %p41
        %p164 = pneg %p38
        %p165 = pneg %p62
        %p166 = pneg %p59
        %p167 = pneg %p88
        %p168 = pneg %p85
        %s169 = sand.u32 %s75, 1
        %s170 = scalar_lea.sflag [#allocation4], %s169
        %s171 = sand.u32 %s75, 1
        %s172 = smul.addr %s171, 8
        %s173 = scalar_lea.vmem [#allocation7], %s172
        %v174 = vld [vmem:[%s149] sm:$0xff]
        %v175 = vld [vmem:[#allocation5] sm:$0xff]
        %v176 = vld [vmem:[#allocation5 + $0x8] sm:$0xff]
        %v177 = vld [vmem:[#allocation5 + $0x10] sm:$0xff]
        %v178 = vld [vmem:[#allocation5 + $0x18] sm:$0xff]
        %v179 = vld [vmem:[#allocation5 + $0x20] sm:$0xff]
        %v180 = vld [vmem:[#allocation5 + $0x28] sm:$0xff]
        %v181 = vld [vmem:[#allocation5 + $0x30] sm:$0xff]
        %v182 = vld [vmem:[#allocation5 + $0x38] sm:$0xff]
        %v183 = vld [vmem:[#allocation5 + $0x40] sm:$0xff]
        %v184 = vld [vmem:[#allocation5 + $0x48] sm:$0xff]
        %v185 = vld [vmem:[#allocation5 + $0x50] sm:$0xff]
        %v186 = vld [vmem:[#allocation5 + $0x58] sm:$0xff]
        %v187 = vld [vmem:[#allocation5 + $0x60] sm:$0xff]
        %v188 = vld [vmem:[#allocation5 + $0x68] sm:$0xff]
        %v189 = vld [vmem:[#allocation5 + $0x70] sm:$0xff]
        %v190 = vld [vmem:[#allocation5 + $0x78] sm:$0xff]
        %191 = vmatprep.subr.mxu0 0.0
        %192 = vmatpush1.msra.mxu0 %v175
        %193 = vmatprep.subr.mxu0 0.0
        %194 = vmatpush1.msra.mxu0 %v176
        %195 = vmatprep.subr.mxu0 0.0
        %196 = vmatpush1.msra.mxu0 %v177
        %197 = vmatprep.subr.mxu0 0.0
        %198 = vmatpush1.msra.mxu0 %v178
        %199 = vmatprep.subr.mxu0 0.0
        %200 = vmatpush1.msra.mxu0 %v179
        %201 = vmatprep.subr.mxu0 0.0
        %202 = vmatpush1.msra.mxu0 %v180
        %203 = vmatprep.subr.mxu0 0.0
        %204 = vmatpush1.msra.mxu0 %v181
        %205 = vmatprep.subr.mxu0 0.0
        %206 = vmatpush1.msra.mxu0 %v182
        %207 = vmatprep.subr.mxu0 0.0
        %208 = vmatpush1.msra.mxu0 %v183
        %209 = vmatprep.subr.mxu0 0.0
        %210 = vmatpush1.msra.mxu0 %v184
        %211 = vmatprep.subr.mxu0 0.0
        %212 = vmatpush1.msra.mxu0 %v185
        %213 = vmatprep.subr.mxu0 0.0
        %214 = vmatpush1.msra.mxu0 %v186
        %215 = vmatprep.subr.mxu0 0.0
        %216 = vmatpush1.msra.mxu0 %v187
        %217 = vmatprep.subr.mxu0 0.0
        %218 = vmatpush1.msra.mxu0 %v188
        %219 = vmatprep.subr.mxu0 0.0
        %220 = vmatpush1.msra.mxu0 %v189
        %221 = vmatprep.subr.mxu0 0.0
        %222 = vmatpush1.msra.mxu0 %v190
        %223 = vmatprep.subr.mxu0 0.0
        %224 = vmatpush1.msra.mxu0 0.0
        %225 = vmatprep.subr.mxu0 0.0
        %226 = vmatpush1.msra.mxu0 0.0
        %227 = vmatprep.subr.mxu0 0.0
        %228 = vmatpush1.msra.mxu0 0.0
        %229 = vmatprep.subr.mxu0 0.0
        %230 = vmatpush1.msra.mxu0 0.0
        %231 = vmatprep.subr.mxu0 0.0
        %232 = vmatpush1.msra.mxu0 0.0
        %233 = vmatprep.subr.mxu0 0.0
        %234 = vmatpush1.msra.mxu0 0.0
        %235 = vmatprep.subr.mxu0 0.0
        %236 = vmatpush1.msra.mxu0 0.0
        %237 = vmatprep.subr.mxu0 0.0
        %238 = vmatpush1.msra.mxu0 0.0
        %239 = vmatprep.subr.mxu0 0.0
        %240 = vmatpush1.msra.mxu0 0.0
        %241 = vmatprep.subr.mxu0 0.0
        %242 = vmatpush1.msra.mxu0 0.0
        %243 = vmatprep.subr.mxu0 0.0
        %244 = vmatpush1.msra.mxu0 0.0
        %245 = vmatprep.subr.mxu0 0.0
        %246 = vmatpush1.msra.mxu0 0.0
        %247 = vmatprep.subr.mxu0 0.0
        %248 = vmatpush1.msra.mxu0 0.0
        %249 = vmatprep.subr.mxu0 0.0
        %250 = vmatpush1.msra.mxu0 0.0
        %251 = vmatprep.subr.mxu0 0.0
        %252 = vmatpush1.msra.mxu0 0.0
        %253 = vmatprep.subr.mxu0 0.0
        %254 = vmatpush1.msra.mxu0 0.0
        %255 = vmatprep.mubr.f32.mxu0 0.0
        %256 = vmatmul.mubr.f32.gmra.mrb[0].mxu0 %v174
        %v257 = vpop.f32.mrb[0].mxu0
        %v258 = vadd.f32 0.0, %v257
        %v259 = vpop.f32.mrb[0].mxu0
        %260 = vdwg.mxu0
        %261 = vst [vmem:[%s173] sm:$0xff] %v258
        %s262 = sand.u32 %s75, 1
        %s263 = scalar_lea.sflag [#allocation4], %s262
        %s264 = sand.u32 %s75, 1
        %s265 = smul.addr %s264, 8
        %s266 = scalar_lea.vmem [#allocation7], %s265
        // Predicated region
        $region37: #{tpu_custom_call.1} parent=27 // pred_check
          %p267 = pneg %p85
        $region38: #{tpu_custom_call.1} parent=27 // pred_check_branch
          %269 = sbr.rel (%p267) target = $region40
        $region39: #{tpu_custom_call.1} parent=27 // pred_region
          %s271 = ssub.s32 128, 128
          %272 = vsyncadd %s263, %s271
          %s273 = smul.addr %s20, 128
          %s274 = scalar_lea.hbm %s2, %s273
          %s276 = sshll.u32 %s266, 4
          %s277 = int_to_ptr.vmem [resolvable:$true] %s276
          %279 = dma.vmem_to_hbm [thread:$0]  %s277, 128, %s274, %s263
        $region40: #{tpu_custom_call.1} parent=27 // pred_fallthru
          _
      $region28: #{tpu_custom_call.1} parent=5 // pred_fallthru
        _
      %p280 = scmp.le.s32.totalorder 2, %s15
      // Predicated region
      $region41: #{tpu_custom_call.1} parent=5 // pred_check
        %p281 = pneg %p280
      $region42: #{tpu_custom_call.1} parent=5 // pred_check_branch
        %283 = sbr.rel (%p281) target = $region44
      $region43: #{tpu_custom_call.1} parent=5 // pred_region
        %s284 = ssub.s32 %s15, 2
        // Predicated region
        $region45: #{tpu_custom_call.1} parent=43 // pred_check
          %p285 = pneg %p91
        $region46: #{tpu_custom_call.1} parent=43 // pred_check_branch
          %287 = sbr.rel (%p285) target = $region48
        $region47: #{tpu_custom_call.1} parent=43 // pred_region
          %s288 = sand.u32 %s76, 1
          %s289 = scalar_lea.sflag [#allocation4], %s288
          %s290 = sand.u32 %s76, 1
          %s291 = smul.addr %s290, 8
          %s292 = scalar_lea.vmem [#allocation7], %s291
          %293 = dma.done %s289, 128
        $region48: #{tpu_custom_call.1} parent=43 // pred_fallthru
          _
      $region44: #{tpu_custom_call.1} parent=5 // pred_fallthru
        _
    $region6: #{tpu_custom_call.1} parent=1 // loop_footer
      %s19 = sadd.s32 1, %s15
    $region7: #{tpu_custom_call.1} parent=1 // loop_footer_branch
      %14 = sbr.rel target = $region3
    $region8: #{tpu_custom_call.1} parent=1 // loop_exit
      _
    %294 = vsyncpa [#allocation3], 1
    %s295 = scalar_lea.sflag [#allocation3], 1
    %296 = vsyncpa %s295, 1
    %297 = vsyncpa [#allocation6], 1
    %298 = vsyncpa [#allocation4], 1
    %s299 = scalar_lea.sflag [#allocation4], 1
    %300 = vsyncpa %s299, 1

</llo_original>
